<compile_context>
chip_gen: v6e
topology: v6e:2x2x1
jax: 0.10.0
libtpu: 0.0.40
codegen_flags: <defaults>
</compile_context>

<pallas_src>
import functools
import math

import jax
import jax.numpy as jnp
from jax import lax
from jax.experimental import pallas as pl
from jax.experimental.pallas import tpu as pltpu


def _sepconv_kernel(x_ref, dw_ref, pw_ref, b_ref, o_ref, *,
                    K_h, K_w, dil_h, dil_w, Wp, L_acc):
    """Fused depthwise conv + pointwise (1x1) conv + bias, one batch element.

    x_ref : (1, Cin, Hp*Wp)   padded input, spatial flattened row-major
    dw_ref: (Cin, K_h*K_w)    depthwise weights (channel, tap)
    pw_ref: (Cout, Cin)       pointwise weights
    b_ref : (Cout, 1)         pointwise bias
    o_ref : (1, Cout, Hd*Wp)  flat dense (stride-1) output; only the first
                              L_acc lanes are valid/written, the wrapper
                              slices the rest away.
    """
    x = x_ref[0].astype(jnp.float32)                          # (Cin, Lp)

    # ---- depthwise conv: lane-dense shifted-slice accumulation (VPU) ----
    # init from the first tap instead of zeros + add (one fewer VPU pass)
    acc = x[:, 0:L_acc] * dw_ref[:, 0:1].astype(jnp.float32)
    for kh in range(K_h):
        for kw in range(K_w):
            if kh == 0 and kw == 0:
                continue
            tap = kh * K_w + kw
            off = kh * dil_h * Wp + kw * dil_w                # flat lane shift
            acc = acc + x[:, off:off + L_acc] * dw_ref[:, tap:tap + 1].astype(jnp.float32)

    # ---- pointwise 1x1 conv: single MXU pass over all spatial lanes ----
    out = jnp.dot(pw_ref[...].astype(jnp.float32), acc,
                  preferred_element_type=jnp.float32)         # (Cout, L_acc)
    out = out + b_ref[...].astype(jnp.float32)

    # lane-dense store (trailing dim is the flat spatial axis, hundreds wide)
    o_ref[0, :, 0:L_acc] = out.astype(o_ref.dtype)


def separable_conv_block(x_nchw, dw_weight, pw_weight, pw_bias, *,
                         stride=1, padding='SAME', dilation=1):
    """Forward pass of SeparableConvBlock (norm=None, activation=None).

    x_nchw   : (N, Cin, H, W)
    dw_weight: (Cin, 1, K_h, K_w)   depthwise conv weight (groups=Cin, no bias)
    pw_weight: (Cout, Cin, 1, 1)    pointwise conv weight
    pw_bias  : (Cout,)              pointwise conv bias
    Returns  : (N, Cout, H_out, W_out)   (NCHW, like the PyTorch module)
    """
    N, Cin, H, W = x_nchw.shape
    Cout = pw_weight.shape[0]
    K_h, K_w = dw_weight.shape[2], dw_weight.shape[3]
    sh, sw = (stride, stride) if isinstance(stride, int) else tuple(stride)
    dh, dw_ = (dilation, dilation) if isinstance(dilation, int) else tuple(dilation)

    # --- padding (SAME, TF-style, matching Conv2dSamePadding) ---
    if isinstance(padding, str) and padding.upper() == 'SAME':
        out_h = math.ceil(H / sh)
        out_w = math.ceil(W / sw)
        pad_h = max(0, (out_h - 1) * sh + (K_h - 1) * dh + 1 - H)
        pad_w = max(0, (out_w - 1) * sw + (K_w - 1) * dw_ + 1 - W)
        top, bottom = pad_h // 2, pad_h - pad_h // 2
        left, right = pad_w // 2, pad_w - pad_w // 2
    else:
        p = int(padding)
        top = bottom = left = right = p
        out_h = (H + 2 * p - dh * (K_h - 1) - 1) // sh + 1
        out_w = (W + 2 * p - dw_ * (K_w - 1) - 1) // sw + 1

    # TODO(synk): fold the SAME border handling into the kernel (masked edge
    # taps) to also drop this single remaining full-input HBM pass.
    x_pad = jnp.pad(x_nchw, ((0, 0), (0, 0), (top, bottom), (left, right)))
    Hp, Wp = x_pad.shape[2], x_pad.shape[3]
    Lp = Hp * Wp
    Hd = Hp - dh * (K_h - 1)          # dense (stride-1) output rows
    Wd = Wp - dw_ * (K_w - 1)         # dense (stride-1) output cols
    L_acc = (Hd - 1) * Wp + Wd        # last valid flat output position + 1
    L_out = Hd * Wp

    # layout glue (all free reshapes / tiny tensors)
    x_flat = x_pad.reshape(N, Cin, Lp)                       # NCHW, flat spatial
    dw_flat = dw_weight[:, 0].reshape(Cin, K_h * K_w)        # (Cin, taps)
    pw_mat = pw_weight[:, :, 0, 0]                           # (Cout, Cin)
    b_col = pw_bias.reshape(Cout, 1)

    kernel = functools.partial(_sepconv_kernel, K_h=K_h, K_w=K_w,
                               dil_h=dh, dil_w=dw_, Wp=Wp, L_acc=L_acc)

    y_flat = pl.pallas_call(
        kernel,
        out_shape=jax.ShapeDtypeStruct((N, Cout, L_out), x_nchw.dtype),
        grid=(N,),
        in_specs=[
            pl.BlockSpec((1, Cin, Lp), lambda n: (n, 0, 0)),
            pl.BlockSpec((Cin, K_h * K_w), lambda n: (0, 0)),
            pl.BlockSpec((Cout, Cin), lambda n: (0, 0)),
            pl.BlockSpec((Cout, 1), lambda n: (0, 0)),
        ],
        out_specs=pl.BlockSpec((1, Cout, L_out), lambda n: (n, 0, 0)),
        compiler_params=pltpu.CompilerParams(
            dimension_semantics=("parallel",)),
    )(x_flat, dw_flat, pw_mat, b_col)

    # Un-flatten, drop wrap-around garbage columns, apply stride.
    # TODO(synk): for stride > 1 the kernel still computes the dense result and
    # it is decimated here; push the stride into the kernel's flat offsets to
    # save ~stride^2 x depthwise / matmul / output-DMA work.
    y = y_flat.reshape(N, Cout, Hd, Wp)[:, :, :, :Wd]
    y = y[:, :, ::sh, ::sw][:, :, :out_h, :out_w]
    return y


def _reference(x_nchw, dw_weight, pw_weight, pw_bias, *, stride, padding, dilation):
    """Pure-JAX reference (lax convs) with the same padding rule."""
    N, Cin, H, W = x_nchw.shape
    K_h, K_w = dw_weight.shape[2], dw_weight.shape[3]
    sh, sw = (stride, stride) if isinstance(stride, int) else tuple(stride)
    dh, dw_ = (dilation, dilation) if isinstance(dilation, int) else tuple(dilation)
    if isinstance(padding, str) and padding.upper() == 'SAME':
        out_h = math.ceil(H / sh)
        out_w = math.ceil(W / sw)
        pad_h = max(0, (out_h - 1) * sh + (K_h - 1) * dh + 1 - H)
        pad_w = max(0, (out_w - 1) * sw + (K_w - 1) * dw_ + 1 - W)
        pads = ((pad_h // 2, pad_h - pad_h // 2), (pad_w // 2, pad_w - pad_w // 2))
    else:
        p = int(padding)
        pads = ((p, p), (p, p))
    dn = ('NCHW', 'OIHW', 'NCHW')
    y = lax.conv_general_dilated(x_nchw, dw_weight, (sh, sw), pads,
                                 rhs_dilation=(dh, dw_),
                                 dimension_numbers=dn,
                                 feature_group_count=Cin)
    y = lax.conv_general_dilated(y, pw_weight, (1, 1), ((0, 0), (0, 0)),
                                 dimension_numbers=dn)
    return y + pw_bias.reshape(1, -1, 1, 1)


if __name__ == "__main__":
    # Module config: SeparableConvBlock(in=8, out=16, kernel_size=3,
    #                                   stride=1, padding='SAME', bias=True)
    N, Cin, Cout, H, W, K = 2, 8, 16, 16, 16, 3
    stride, padding, dilation = 1, 'SAME', 1

    key = jax.random.PRNGKey(0)
    kx, kdw, kpw, kb = jax.random.split(key, 4)
    x = jax.random.normal(kx, (N, Cin, H, W), dtype=jnp.float32)
    dw_weight = jax.random.normal(kdw, (Cin, 1, K, K), dtype=jnp.float32) * 0.1
    pw_weight = jax.random.normal(kpw, (Cout, Cin, 1, 1), dtype=jnp.float32) * 0.1
    pw_bias = jax.random.normal(kb, (Cout,), dtype=jnp.float32) * 0.1

    fwd = jax.jit(functools.partial(separable_conv_block, stride=stride,
                                    padding=padding, dilation=dilation))
    y = fwd(x, dw_weight, pw_weight, pw_bias)
    y = jax.block_until_ready(y)

    y_ref = _reference(x, dw_weight, pw_weight, pw_bias,
                       stride=stride, padding=padding, dilation=dilation)
    assert y.shape == y_ref.shape, (y.shape, y_ref.shape)
    assert jnp.max(jnp.abs(y - y_ref)) < 1e-4, float(jnp.max(jnp.abs(y - y_ref)))
    print("KERNEL_OK")
</pallas_src>

<mosaic_0001>
module attributes {stable_mosaic.version = 11 : i64} {
  func.func @_sepconv_kernel(%arg0: i32, %arg1: memref<1x8x324xf32, #tpu.memory_space<vmem>>, %arg2: memref<8x9xf32, #tpu.memory_space<vmem>>, %arg3: memref<16x8xf32, #tpu.memory_space<vmem>>, %arg4: memref<16x1xf32, #tpu.memory_space<vmem>>, %arg5: memref<1x16x288xf32, #tpu.memory_space<vmem>>) attributes {dimension_semantics = [#tpu.dimension_semantics<parallel>], iteration_bounds = array<i64: 2>, scalar_prefetch = 0 : i64, scratch_operands = 0 : i64, tpu.core_type = #tpu.core_type<tc>, window_params = [{transform_indices = @transform_0, window_bounds = array<i64: 1, 8, 324>}, {pipeline_mode = #tpu.pipeline_mode<synchronous>, transform_indices = @transform_1, window_bounds = array<i64: 8, 9>}, {pipeline_mode = #tpu.pipeline_mode<synchronous>, transform_indices = @transform_2, window_bounds = array<i64: 16, 8>}, {pipeline_mode = #tpu.pipeline_mode<synchronous>, transform_indices = @transform_3, window_bounds = array<i64: 16, 1>}, {transform_indices = @transform_4, window_bounds = array<i64: 1, 16, 288>}]} {
    %c0 = arith.constant 0 : index
    %c0_0 = arith.constant 0 : index
    %c0_1 = arith.constant 0 : index
    %0 = vector.load %arg1[%c0, %c0_0, %c0_1] : memref<1x8x324xf32, #tpu.memory_space<vmem>>, vector<1x8x324xf32>
    %1 = vector.shape_cast %0 : vector<1x8x324xf32> to vector<8x324xf32>
    %2 = vector.extract_strided_slice %1 {offsets = [0, 0], sizes = [8, 286], strides = [1, 1]} : vector<8x324xf32> to vector<8x286xf32>
    %c0_2 = arith.constant 0 : index
    %c0_3 = arith.constant 0 : index
    %3 = vector.load %arg2[%c0_2, %c0_3] : memref<8x9xf32, #tpu.memory_space<vmem>>, vector<8x1xf32>
    %4 = vector.broadcast %3 : vector<8x1xf32> to vector<8x286xf32>
    %5 = arith.mulf %2, %4 : vector<8x286xf32>
    %6 = vector.extract_strided_slice %1 {offsets = [0, 1], sizes = [8, 286], strides = [1, 1]} : vector<8x324xf32> to vector<8x286xf32>
    %c0_4 = arith.constant 0 : index
    %c1 = arith.constant 1 : index
    %7 = vector.load %arg2[%c0_4, %c1] : memref<8x9xf32, #tpu.memory_space<vmem>>, vector<8x1xf32>
    %8 = vector.broadcast %7 : vector<8x1xf32> to vector<8x286xf32>
    %9 = arith.mulf %6, %8 : vector<8x286xf32>
    %10 = arith.addf %5, %9 : vector<8x286xf32>
    %11 = vector.extract_strided_slice %1 {offsets = [0, 2], sizes = [8, 286], strides = [1, 1]} : vector<8x324xf32> to vector<8x286xf32>
    %c0_5 = arith.constant 0 : index
    %c2 = arith.constant 2 : index
    %12 = vector.load %arg2[%c0_5, %c2] : memref<8x9xf32, #tpu.memory_space<vmem>>, vector<8x1xf32>
    %13 = vector.broadcast %12 : vector<8x1xf32> to vector<8x286xf32>
    %14 = arith.mulf %11, %13 : vector<8x286xf32>
    %15 = arith.addf %10, %14 : vector<8x286xf32>
    %16 = vector.extract_strided_slice %1 {offsets = [0, 18], sizes = [8, 286], strides = [1, 1]} : vector<8x324xf32> to vector<8x286xf32>
    %c0_6 = arith.constant 0 : index
    %c3 = arith.constant 3 : index
    %17 = vector.load %arg2[%c0_6, %c3] : memref<8x9xf32, #tpu.memory_space<vmem>>, vector<8x1xf32>
    %18 = vector.broadcast %17 : vector<8x1xf32> to vector<8x286xf32>
    %19 = arith.mulf %16, %18 : vector<8x286xf32>
    %20 = arith.addf %15, %19 : vector<8x286xf32>
    %21 = vector.extract_strided_slice %1 {offsets = [0, 19], sizes = [8, 286], strides = [1, 1]} : vector<8x324xf32> to vector<8x286xf32>
    %c0_7 = arith.constant 0 : index
    %c4 = arith.constant 4 : index
    %22 = vector.load %arg2[%c0_7, %c4] : memref<8x9xf32, #tpu.memory_space<vmem>>, vector<8x1xf32>
    %23 = vector.broadcast %22 : vector<8x1xf32> to vector<8x286xf32>
    %24 = arith.mulf %21, %23 : vector<8x286xf32>
    %25 = arith.addf %20, %24 : vector<8x286xf32>
    %26 = vector.extract_strided_slice %1 {offsets = [0, 20], sizes = [8, 286], strides = [1, 1]} : vector<8x324xf32> to vector<8x286xf32>
    %c0_8 = arith.constant 0 : index
    %c5 = arith.constant 5 : index
    %27 = vector.load %arg2[%c0_8, %c5] : memref<8x9xf32, #tpu.memory_space<vmem>>, vector<8x1xf32>
    %28 = vector.broadcast %27 : vector<8x1xf32> to vector<8x286xf32>
    %29 = arith.mulf %26, %28 : vector<8x286xf32>
    %30 = arith.addf %25, %29 : vector<8x286xf32>
    %31 = vector.extract_strided_slice %1 {offsets = [0, 36], sizes = [8, 286], strides = [1, 1]} : vector<8x324xf32> to vector<8x286xf32>
    %c0_9 = arith.constant 0 : index
    %c6 = arith.constant 6 : index
    %32 = vector.load %arg2[%c0_9, %c6] : memref<8x9xf32, #tpu.memory_space<vmem>>, vector<8x1xf32>
    %33 = vector.broadcast %32 : vector<8x1xf32> to vector<8x286xf32>
    %34 = arith.mulf %31, %33 : vector<8x286xf32>
    %35 = arith.addf %30, %34 : vector<8x286xf32>
    %36 = vector.extract_strided_slice %1 {offsets = [0, 37], sizes = [8, 286], strides = [1, 1]} : vector<8x324xf32> to vector<8x286xf32>
    %c0_10 = arith.constant 0 : index
    %c7 = arith.constant 7 : index
    %37 = vector.load %arg2[%c0_10, %c7] : memref<8x9xf32, #tpu.memory_space<vmem>>, vector<8x1xf32>
    %38 = vector.broadcast %37 : vector<8x1xf32> to vector<8x286xf32>
    %39 = arith.mulf %36, %38 : vector<8x286xf32>
    %40 = arith.addf %35, %39 : vector<8x286xf32>
    %41 = vector.extract_strided_slice %1 {offsets = [0, 38], sizes = [8, 286], strides = [1, 1]} : vector<8x324xf32> to vector<8x286xf32>
    %c0_11 = arith.constant 0 : index
    %c8 = arith.constant 8 : index
    %42 = vector.load %arg2[%c0_11, %c8] : memref<8x9xf32, #tpu.memory_space<vmem>>, vector<8x1xf32>
    %43 = vector.broadcast %42 : vector<8x1xf32> to vector<8x286xf32>
    %44 = arith.mulf %41, %43 : vector<8x286xf32>
    %45 = arith.addf %40, %44 : vector<8x286xf32>
    %c0_12 = arith.constant 0 : index
    %c0_13 = arith.constant 0 : index
    %46 = vector.load %arg3[%c0_12, %c0_13] : memref<16x8xf32, #tpu.memory_space<vmem>>, vector<16x8xf32>
    %cst = arith.constant dense<0.000000e+00> : vector<16x286xf32>
    %47 = tpu.matmul %46, %45, %cst {dimension_numbers = #tpu.dot_dimension_numbers<[1], [0], [0], [1], [0, 0, 1, 1], [], []>} : vector<16x8xf32>, vector<8x286xf32>, vector<16x286xf32> -> vector<16x286xf32>
    %c0_14 = arith.constant 0 : index
    %c0_15 = arith.constant 0 : index
    %48 = vector.load %arg4[%c0_14, %c0_15] : memref<16x1xf32, #tpu.memory_space<vmem>>, vector<16x1xf32>
    %49 = vector.broadcast %48 : vector<16x1xf32> to vector<16x286xf32>
    %50 = arith.addf %47, %49 : vector<16x286xf32>
    %c0_16 = arith.constant 0 : index
    %c0_17 = arith.constant 0 : index
    %c0_18 = arith.constant 0 : index
    %51 = vector.load %arg5[%c0_16, %c0_17, %c0_18] : memref<1x16x288xf32, #tpu.memory_space<vmem>>, vector<1x16x286xf32>
    %52 = vector.shape_cast %51 : vector<1x16x286xf32> to vector<16x286xf32>
    %53 = vector.shape_cast %50 : vector<16x286xf32> to vector<1x16x286xf32>
    tpu.vector_store %arg5[%c0_16, %c0_17, %c0_18], %53 {strides = array<i32>} : memref<1x16x288xf32, #tpu.memory_space<vmem>>, vector<1x16x286xf32>,
    return
  }
  func.func @transform_0(%arg0: i32) -> (i32, i32, i32) {
    %c0_i32 = arith.constant 0 : i32
    %c0_i32_0 = arith.constant 0 : i32
    %c0_i32_1 = arith.constant 0 : i32
    return %arg0, %c0_i32, %c0_i32_0 : i32, i32, i32
  }
  func.func @transform_1(%arg0: i32) -> (i32, i32) {
    %c0_i32 = arith.constant 0 : i32
    %c0_i32_0 = arith.constant 0 : i32
    %c0_i32_1 = arith.constant 0 : i32
    return %c0_i32, %c0_i32_0 : i32, i32
  }
  func.func @transform_2(%arg0: i32) -> (i32, i32) {
    %c0_i32 = arith.constant 0 : i32
    %c0_i32_0 = arith.constant 0 : i32
    %c0_i32_1 = arith.constant 0 : i32
    return %c0_i32, %c0_i32_0 : i32, i32
  }
  func.func @transform_3(%arg0: i32) -> (i32, i32) {
    %c0_i32 = arith.constant 0 : i32
    %c0_i32_0 = arith.constant 0 : i32
    %c0_i32_1 = arith.constant 0 : i32
    return %c0_i32, %c0_i32_0 : i32, i32
  }
  func.func @transform_4(%arg0: i32) -> (i32, i32, i32) {
    %c0_i32 = arith.constant 0 : i32
    %c0_i32_0 = arith.constant 0 : i32
    %c0_i32_1 = arith.constant 0 : i32
    return %arg0, %c0_i32, %c0_i32_0 : i32, i32, i32
  }
}

</mosaic_0001>

<llo_original>
// kernel: squeeze.2
$region0: #{squeeze.2}
  %s0 = inlined_call_operand.vmem [shape: f32[8,3,3], index: 0, kind: input, shape index: {}]
  %s1 = inlined_call_operand.vmem [shape: f32[8,9], index: 1, kind: output, shape index: {}]
  $region1: #{squeeze.2} parent=0
    #allocation0 [shape = 'u8[12288]{0}', space=vmem, size = 0x3000, scoped, tag = 'scoped mem for input reshape']
    %s3 = sshll.u32 1, 4
    %s4 = ssub.s32 %s3, 1
    %s5 = smul.addr 4, 2
    %s6 = scalar_lea.vmem %s0, %s5
    %v7 = vld [vmem:[%s6] sm:%s4]
    %s8 = scalar_lea.vmem [#allocation0], 16
    %9 = vst [vmem:[%s8] sm:%s4] %v7
    %s10 = scalar_lea.vmem %s0, 4
    %v11 = vld [vmem:[%s10] sm:%s4]
    %s12 = scalar_lea.vmem [#allocation0], 8
    %13 = vst [vmem:[%s12] sm:%s4] %v11
    %v14 = vld [vmem:[%s0] sm:%s4]
    %15 = vst [vmem:[#allocation0] sm:%s4] %v14
    %v16 = vld [vmem:[#allocation0] sm:$0x7]
    %vm17 = vcmask 64512
    %18 = vst.msk [vmem:[%s1] sm:$0x7] %vm17, %v16
    %s19 = scalar_lea.vmem [#allocation0], 8
    %v20 = vld [vmem:[%s19] sm:$0x7]
    %vm21 = vcmask 64512
    %s22 = scalar_lea.vmem %s1, 3
    %23 = vst.msk [vmem:[%s22] sm:$0x7] %vm21, %v20
    %s24 = scalar_lea.vmem [#allocation0], 16
    %v25 = vld [vmem:[%s24] sm:$0x7]
    %vm26 = vcmask 64512
    %s27 = scalar_lea.vmem %s1, 6
    %28 = vst.msk [vmem:[%s27] sm:$0x7] %vm26, %v25

// kernel: separable_conv_block.1
$region0: #{separable_conv_block.1}
  #allocation0 [shape = 'u32[]', space=smem, size = 0x4, offset = 0x4, fixed_abs, tag = 'smem constant byte address 0x4 - core index']
  #allocation1 [shape = 'u32[144,128]{1,0:T(1,128)}', space=vmem, size = 0x12000, scoped, tag = 'internal scratch']
  %s0 = inlined_call_operand.vmem [shape: f32[2,8,324], index: 0, kind: input, shape index: {}]
  %s1 = inlined_call_operand.vmem [shape: f32[8,9], index: 1, kind: input, shape index: {}]
  %s2 = inlined_call_operand.vmem [shape: f32[16,8], index: 2, kind: input, shape index: {}]
  %s3 = inlined_call_operand.vmem [shape: f32[16,1], index: 3, kind: input, shape index: {}]
  %s4 = inlined_call_operand.vmem [shape: f32[2,16,288], index: 4, kind: output, shape index: {}]
  %s5 = sld [smem:[#allocation0]]
  $region49: #{separable_conv_block.1} parent=0
    _
  %s7 = ssub.s32 1, %s5
  %s8 = scalar_select 0, %s7, %s5
  loop: start=0, step=1, limit=4
  $region2: #{separable_conv_block.1} parent=0 // loop_pre_header
    _
  $region3: #{separable_conv_block.1} parent=0 // loop_header
    %s10 = sphi 0, %s14
    %p11 = scmp.ge.s32.totalorder %s10, 4
    %s20 = sphi 0, %s22
    %s23 = sphi 0, %s20
    %s24 = sphi 0, %s23
    %s40 = sphi 0, %s24
    %s44 = sphi 0, %s44
    %s46 = sphi 0, %s44
    %s47 = sphi 0, %s46
    %s61 = sphi 0, %s47
    %s65 = sphi 0, %s65
    %s67 = sphi 0, %s65
    %s68 = sphi 0, %s67
    %s82 = sphi 0, %s68
    %s86 = sphi 0, %s86
    %s88 = sphi 0, %s86
    %s89 = sphi 0, %s88
    %s103 = sphi 0, %s89
    %s109 = sphi 0, %s111
    %s112 = sphi 0, %s109
    %s113 = sphi 0, %s112
    %s129 = sphi 0, %s113
  $region4: #{separable_conv_block.1} parent=0 // loop_header_branch
    %13 = sbr.rel (%p11) target = $region8
  $region5: #{separable_conv_block.1} parent=0 // loop_body
    %s15 = ssub.s32 %s10, 1
    %s16 = ssub.s32 %s10, 2
    %s17 = sadd.s32 %s10, 1
    %s18 = ssub.s32 %s10, %s17
    %p19 = scmp.eq.s32.totalorder %s18, 0
    %s21 = sadd.s32 %s20, 1
    %s22 = scalar_select %p19, %s20, %s21
    %p25 = pneg %p19
    %p26 = scmp.eq.s32.totalorder %s10, 1
    %p27 = por %p25, %p26
    %p28 = scmp.ne.s32.totalorder %s20, %s23
    %p29 = scmp.eq.s32.totalorder %s10, 0
    %p30 = por %p28, %p29
    %p31 = scmp.ne.s32.totalorder %s20, %s23
    %p32 = scmp.eq.s32.totalorder %s15, 1
    %p33 = por %p31, %p32
    %p34 = scmp.ne.s32.totalorder %s23, %s24
    %p35 = scmp.eq.s32.totalorder %s15, 0
    %p36 = por %p34, %p35
    %p37 = scmp.ne.s32.totalorder %s23, %s24
    %p38 = scmp.eq.s32.totalorder %s16, 1
    %p39 = por %p37, %p38
    %p41 = scmp.ne.s32.totalorder %s24, %s40
    %p42 = scmp.eq.s32.totalorder %s16, 0
    %p43 = por %p41, %p42
    %s45 = sadd.s32 %s44, 1
    %p48 = scmp.eq.s32.totalorder %s10, 1
    %p49 = scmp.ne.s32.totalorder %s44, %s46
    %p50 = scmp.eq.s32.totalorder %s10, 0
    %p51 = por %p49, %p50
    %p52 = scmp.ne.s32.totalorder %s44, %s46
    %p53 = scmp.eq.s32.totalorder %s15, 1
    %p54 = por %p52, %p53
    %p55 = scmp.ne.s32.totalorder %s46, %s47
    %p56 = scmp.eq.s32.totalorder %s15, 0
    %p57 = por %p55, %p56
    %p58 = scmp.ne.s32.totalorder %s46, %s47
    %p59 = scmp.eq.s32.totalorder %s16, 1
    %p60 = por %p58, %p59
    %p62 = scmp.ne.s32.totalorder %s47, %s61
    %p63 = scmp.eq.s32.totalorder %s16, 0
    %p64 = por %p62, %p63
    %s66 = sadd.s32 %s65, 1
    %p69 = scmp.eq.s32.totalorder %s10, 1
    %p70 = scmp.ne.s32.totalorder %s65, %s67
    %p71 = scmp.eq.s32.totalorder %s10, 0
    %p72 = por %p70, %p71
    %p73 = scmp.ne.s32.totalorder %s65, %s67
    %p74 = scmp.eq.s32.totalorder %s15, 1
    %p75 = por %p73, %p74
    %p76 = scmp.ne.s32.totalorder %s67, %s68
    %p77 = scmp.eq.s32.totalorder %s15, 0
    %p78 = por %p76, %p77
    %p79 = scmp.ne.s32.totalorder %s67, %s68
    %p80 = scmp.eq.s32.totalorder %s16, 1
    %p81 = por %p79, %p80
    %p83 = scmp.ne.s32.totalorder %s68, %s82
    %p84 = scmp.eq.s32.totalorder %s16, 0
    %p85 = por %p83, %p84
    %s87 = sadd.s32 %s86, 1
    %p90 = scmp.eq.s32.totalorder %s10, 1
    %p91 = scmp.ne.s32.totalorder %s86, %s88
    %p92 = scmp.eq.s32.totalorder %s10, 0
    %p93 = por %p91, %p92
    %p94 = scmp.ne.s32.totalorder %s86, %s88
    %p95 = scmp.eq.s32.totalorder %s15, 1
    %p96 = por %p94, %p95
    %p97 = scmp.ne.s32.totalorder %s88, %s89
    %p98 = scmp.eq.s32.totalorder %s15, 0
    %p99 = por %p97, %p98
    %p100 = scmp.ne.s32.totalorder %s88, %s89
    %p101 = scmp.eq.s32.totalorder %s16, 1
    %p102 = por %p100, %p101
    %p104 = scmp.ne.s32.totalorder %s89, %s103
    %p105 = scmp.eq.s32.totalorder %s16, 0
    %p106 = por %p104, %p105
    %s107 = ssub.s32 %s10, %s17
    %p108 = scmp.eq.s32.totalorder %s107, 0
    %s110 = sadd.s32 %s109, 1
    %s111 = scalar_select %p108, %s109, %s110
    %p114 = pneg %p108
    %p115 = scmp.eq.s32.totalorder %s10, 1
    %p116 = por %p114, %p115
    %p117 = scmp.ne.s32.totalorder %s109, %s112
    %p118 = scmp.eq.s32.totalorder %s10, 0
    %p119 = por %p117, %p118
    %p120 = scmp.ne.s32.totalorder %s109, %s112
    %p121 = scmp.eq.s32.totalorder %s15, 1
    %p122 = por %p120, %p121
    %p123 = scmp.ne.s32.totalorder %s112, %s113
    %p124 = scmp.eq.s32.totalorder %s15, 0
    %p125 = por %p123, %p124
    %p126 = scmp.ne.s32.totalorder %s112, %s113
    %p127 = scmp.eq.s32.totalorder %s16, 1
    %p128 = por %p126, %p127
    %p130 = scmp.ne.s32.totalorder %s113, %s129
    %p131 = scmp.eq.s32.totalorder %s16, 0
    %p132 = por %p130, %p131
    %p133 = scmp.le.s32.totalorder 1, %s10
    %p134 = scmp.lt.s32.totalorder %s10, 3
    %p135 = pnand %p133, %p134
    %p136 = pneg %p135
    // Predicated region
    $region9: #{separable_conv_block.1} parent=5 // pred_check
      _
    $region10: #{separable_conv_block.1} parent=5 // pred_check_branch
      %138 = sbr.rel (%p135) target = $region12
    $region11: #{separable_conv_block.1} parent=5 // pred_region
      %s139 = ssub.s32 %s10, 1
      // Predicated region
      $region13: #{separable_conv_block.1} parent=11 // pred_check
        %p140 = pneg %p57
      $region14: #{separable_conv_block.1} parent=11 // pred_check_branch
        %142 = sbr.rel (%p140) target = $region16
      $region15: #{separable_conv_block.1} parent=11 // pred_region
        _
      $region16: #{separable_conv_block.1} parent=11 // pred_fallthru
        _
      // Predicated region
      $region17: #{separable_conv_block.1} parent=11 // pred_check
        %p143 = pneg %p78
      $region18: #{separable_conv_block.1} parent=11 // pred_check_branch
        %145 = sbr.rel (%p143) target = $region20
      $region19: #{separable_conv_block.1} parent=11 // pred_region
        _
      $region20: #{separable_conv_block.1} parent=11 // pred_fallthru
        _
      // Predicated region
      $region21: #{separable_conv_block.1} parent=11 // pred_check
        %p146 = pneg %p99
      $region22: #{separable_conv_block.1} parent=11 // pred_check_branch
        %148 = sbr.rel (%p146) target = $region24
      $region23: #{separable_conv_block.1} parent=11 // pred_region
        _
      $region24: #{separable_conv_block.1} parent=11 // pred_fallthru
        _
    $region12: #{separable_conv_block.1} parent=5 // pred_fallthru
      _
    %p149 = scmp.lt.s32.totalorder %s10, 2
    // Predicated region
    $region25: #{separable_conv_block.1} parent=5 // pred_check
      %p150 = pneg %p149
    $region26: #{separable_conv_block.1} parent=5 // pred_check_branch
      %152 = sbr.rel (%p150) target = $region28
    $region27: #{separable_conv_block.1} parent=5 // pred_region
      // Predicated region
      $region29: #{separable_conv_block.1} parent=27 // pred_check
        %p153 = pneg %p30
      $region30: #{separable_conv_block.1} parent=27 // pred_check_branch
        %155 = sbr.rel (%p153) target = $region32
      $region31: #{separable_conv_block.1} parent=27 // pred_region
        %p156 = scmp.lt.s32.totalorder %s10, 1
        %s157 = scalar_select %p156, %s10, 1
        %s158 = smul.addr %s157, 3
        %s159 = smul.addr %s158, 8
        %s160 = scalar_lea.vmem %s0, %s159
      $region32: #{separable_conv_block.1} parent=27 // pred_fallthru
        _
    $region28: #{separable_conv_block.1} parent=5 // pred_fallthru
      _
    %p161 = scmp.le.s32.totalorder 1, %s10
    %p162 = scmp.lt.s32.totalorder %s10, 3
    %p163 = pnand %p161, %p162
    %p164 = pneg %p163
    // Predicated region
    $region33: #{separable_conv_block.1} parent=5 // pred_check
      _
    $region34: #{separable_conv_block.1} parent=5 // pred_check_branch
      %166 = sbr.rel (%p163) target = $region36
    $region35: #{separable_conv_block.1} parent=5 // pred_region
      %s167 = ssub.s32 %s10, 1
      %p168 = scmp.lt.s32.totalorder %s15, 1
      %s169 = scalar_select %p168, %s15, 1
      %s170 = smul.addr %s169, 3
      %s171 = smul.addr %s170, 8
      %s172 = scalar_lea.vmem %s0, %s171
      %p173 = pneg %p36
      %p174 = pneg %p33
      %p175 = pneg %p57
      %p176 = pneg %p54
      %p177 = pneg %p78
      %p178 = pneg %p75
      %p179 = pneg %p99
      %p180 = pneg %p96
      %p181 = pneg %p125
      %p182 = pneg %p122
      %p183 = scmp.lt.s32.totalorder %s15, 1
      %s184 = scalar_select %p183, %s15, 1
      %s185 = smul.addr %s184, 6
      %s186 = smul.addr %s185, 8
      %s187 = scalar_lea.vmem %s4, %s186
      %p188 = scmp.lt.s32.totalorder %s15, 1
      %s189 = scalar_select %p188, %s15, 1
      %s190 = smul.addr %s189, 3
      %s191 = smul.addr %s190, 8
      %s192 = scalar_lea.vmem %s0, %s191
      %p193 = scmp.lt.s32.totalorder %s15, 1
      %s194 = scalar_select %p193, %s15, 1
      %s195 = smul.addr %s194, 6
      %s196 = smul.addr %s195, 8
      %s197 = scalar_lea.vmem %s4, %s196
      %v198 = vld [vmem:[%s192] sm:$0xff]
      %v199 = vld [vmem:[%s192 + $0x8] sm:$0xff]
      %v200 = vld [vmem:[%s192 + $0x10] sm:$0xff]
      %v201 = vld [vmem:[%s1] sm:$0xff]
      %203 = vset.pattern.permute.xlu0 0
      %204 = vperm.xlu0 %203, %v201
      %v205 = vpop.permute.xlu0 %204
      %v207 = vmul.f32 %v198, %v205
      %v208 = vmul.f32 %v199, %v205
      %v209 = vmul.f32 %v200, %v205
      %210 = vset.pattern.permute.xlu0 1
      %211 = vperm.xlu0 %210, %v201
      %v212 = vpop.permute.xlu0 %211
      %v214 = vmul.f32 %v198, %v212
      %v215 = vmul.f32 %v199, %v212
      %v216 = vmul.f32 %v200, %v212
      %220 = vrot.lane.b32.xlu0 %v214, 127
      %v221 = vpop.permute.xlu0 %220
      %222 = vrot.lane.b32.xlu0 %v215, 127
      %v223 = vpop.permute.xlu0 %222
      %224 = vrot.lane.b32.xlu0 %v216, 127
      %v225 = vpop.permute.xlu0 %224
      %vm226 = vcmask 1039360
      %v227 = vsel %vm226, %v221, %v223
      %v228 = vsel %vm226, %v223, %v225
      %v232 = vadd.f32 %v207, %v227
      %v233 = vadd.f32 %v208, %v228
      %v234 = vadd.f32 %v209, %v225
      %235 = vset.pattern.permute.xlu0 2
      %236 = vperm.xlu0 %235, %v201
      %v237 = vpop.permute.xlu0 %236
      %v239 = vmul.f32 %v198, %v237
      %v240 = vmul.f32 %v199, %v237
      %v241 = vmul.f32 %v200, %v237
      %245 = vrot.lane.b32.xlu0 %v239, 126
      %v246 = vpop.permute.xlu0 %245
      %247 = vrot.lane.b32.xlu0 %v240, 126
      %v248 = vpop.permute.xlu0 %247
      %249 = vrot.lane.b32.xlu0 %v241, 126
      %v250 = vpop.permute.xlu0 %249
      %vm251 = vcmask 1031168
      %v252 = vsel %vm251, %v246, %v248
      %v253 = vsel %vm251, %v248, %v250
      %v257 = vadd.f32 %v232, %v252
      %v258 = vadd.f32 %v233, %v253
      %v259 = vadd.f32 %v234, %v250
      %260 = vset.pattern.permute.xlu0 3
      %261 = vperm.xlu0 %260, %v201
      %v262 = vpop.permute.xlu0 %261
      %v264 = vmul.f32 %v198, %v262
      %v265 = vmul.f32 %v199, %v262
      %v266 = vmul.f32 %v200, %v262
      %270 = vrot.lane.b32.xlu0 %v264, 110
      %v271 = vpop.permute.xlu0 %270
      %272 = vrot.lane.b32.xlu0 %v265, 110
      %v273 = vpop.permute.xlu0 %272
      %274 = vrot.lane.b32.xlu0 %v266, 110
      %v275 = vpop.permute.xlu0 %274
      %vm276 = vcmask 900096
      %v277 = vsel %vm276, %v271, %v273
      %v278 = vsel %vm276, %v273, %v275
      %v282 = vadd.f32 %v257, %v277
      %v283 = vadd.f32 %v258, %v278
      %v284 = vadd.f32 %v259, %v275
      %285 = vset.pattern.permute.xlu0 4
      %286 = vperm.xlu0 %285, %v201
      %v287 = vpop.permute.xlu0 %286
      %v289 = vmul.f32 %v198, %v287
      %v290 = vmul.f32 %v199, %v287
      %v291 = vmul.f32 %v200, %v287
      %295 = vrot.lane.b32.xlu0 %v289, 109
      %v296 = vpop.permute.xlu0 %295
      %297 = vrot.lane.b32.xlu0 %v290, 109
      %v298 = vpop.permute.xlu0 %297
      %299 = vrot.lane.b32.xlu0 %v291, 109
      %v300 = vpop.permute.xlu0 %299
      %vm301 = vcmask 891904
      %v302 = vsel %vm301, %v296, %v298
      %v303 = vsel %vm301, %v298, %v300
      %v307 = vadd.f32 %v282, %v302
      %v308 = vadd.f32 %v283, %v303
      %v309 = vadd.f32 %v284, %v300
      %310 = vset.pattern.permute.xlu0 5
      %311 = vperm.xlu0 %310, %v201
      %v312 = vpop.permute.xlu0 %311
      %v314 = vmul.f32 %v198, %v312
      %v315 = vmul.f32 %v199, %v312
      %v316 = vmul.f32 %v200, %v312
      %320 = vrot.lane.b32.xlu0 %v314, 108
      %v321 = vpop.permute.xlu0 %320
      %322 = vrot.lane.b32.xlu0 %v315, 108
      %v323 = vpop.permute.xlu0 %322
      %324 = vrot.lane.b32.xlu0 %v316, 108
      %v325 = vpop.permute.xlu0 %324
      %vm326 = vcmask 883712
      %v327 = vsel %vm326, %v321, %v323
      %v328 = vsel %vm326, %v323, %v325
      %v332 = vadd.f32 %v307, %v327
      %v333 = vadd.f32 %v308, %v328
      %v334 = vadd.f32 %v309, %v325
      %335 = vset.pattern.permute.xlu0 6
      %336 = vperm.xlu0 %335, %v201
      %v337 = vpop.permute.xlu0 %336
      %v339 = vmul.f32 %v198, %v337
      %v340 = vmul.f32 %v199, %v337
      %v341 = vmul.f32 %v200, %v337
      %345 = vrot.lane.b32.xlu0 %v339, 92
      %v346 = vpop.permute.xlu0 %345
      %347 = vrot.lane.b32.xlu0 %v340, 92
      %v348 = vpop.permute.xlu0 %347
      %349 = vrot.lane.b32.xlu0 %v341, 92
      %v350 = vpop.permute.xlu0 %349
      %vm351 = vcmask 752640
      %v352 = vsel %vm351, %v346, %v348
      %v353 = vsel %vm351, %v348, %v350
      %v357 = vadd.f32 %v332, %v352
      %v358 = vadd.f32 %v333, %v353
      %v359 = vadd.f32 %v334, %v350
      %360 = vset.pattern.permute.xlu0 7
      %361 = vperm.xlu0 %360, %v201
      %v362 = vpop.permute.xlu0 %361
      %v364 = vmul.f32 %v198, %v362
      %v365 = vmul.f32 %v199, %v362
      %v366 = vmul.f32 %v200, %v362
      %370 = vrot.lane.b32.xlu0 %v364, 91
      %v371 = vpop.permute.xlu0 %370
      %372 = vrot.lane.b32.xlu0 %v365, 91
      %v373 = vpop.permute.xlu0 %372
      %374 = vrot.lane.b32.xlu0 %v366, 91
      %v375 = vpop.permute.xlu0 %374
      %vm376 = vcmask 744448
      %v377 = vsel %vm376, %v371, %v373
      %v378 = vsel %vm376, %v373, %v375
      %v382 = vadd.f32 %v357, %v377
      %v383 = vadd.f32 %v358, %v378
      %v384 = vadd.f32 %v359, %v375
      %385 = vset.pattern.permute.xlu0 8
      %386 = vperm.xlu0 %385, %v201
      %v387 = vpop.permute.xlu0 %386
      %v389 = vmul.f32 %v198, %v387
      %v390 = vmul.f32 %v199, %v387
      %v391 = vmul.f32 %v200, %v387
      %395 = vrot.lane.b32.xlu0 %v389, 90
      %v396 = vpop.permute.xlu0 %395
      %397 = vrot.lane.b32.xlu0 %v390, 90
      %v398 = vpop.permute.xlu0 %397
      %399 = vrot.lane.b32.xlu0 %v391, 90
      %v400 = vpop.permute.xlu0 %399
      %vm401 = vcmask 736256
      %v402 = vsel %vm401, %v396, %v398
      %v403 = vsel %vm401, %v398, %v400
      %v407 = vadd.f32 %v382, %v402
      %v408 = vadd.f32 %v383, %v403
      %v409 = vadd.f32 %v384, %v400
      %v410 = vld [vmem:[%s2] sm:$0xff]
      %v411 = vld [vmem:[%s2 + $0x8] sm:$0xff]
      %v412 = vld [vmem:[%s3] sm:$0xff]
      %v413 = vld [vmem:[%s3 + $0x8] sm:$0xff]
      %415 = vset.pattern.permute.xlu0 0
      %416 = vperm.xlu0 %415, %v412
      %v417 = vpop.permute.xlu0 %416
      %420 = vset.pattern.permute.xlu0 0
      %421 = vperm.xlu0 %420, %v413
      %v422 = vpop.permute.xlu0 %421
      %vm424 = vcmask 64512
      %v426 = vsel %vm424, %v410, 0
      %v429 = vsel %vm424, %v411, 0
      %431 = vmatprep.subr.mxu0 0.0
      %432 = vmatpush1.msra.mxu0 0.0
      %433 = vmatprep.subr.mxu0 0.0
      %434 = vmatpush1.msra.mxu0 0.0
      %435 = vmatprep.subr.mxu0 0.0
      %436 = vmatpush1.msra.mxu0 0.0
      %437 = vmatprep.subr.mxu0 0.0
      %438 = vmatpush1.msra.mxu0 0.0
      %439 = vmatprep.subr.mxu0 0.0
      %440 = vmatpush1.msra.mxu0 0.0
      %441 = vmatprep.subr.mxu0 0.0
      %442 = vmatpush1.msra.mxu0 0.0
      %443 = vmatprep.subr.mxu0 0.0
      %444 = vmatpush1.msra.mxu0 0.0
      %445 = vmatprep.subr.mxu0 0.0
      %446 = vmatpush1.msra.mxu0 0.0
      %447 = vmatprep.subr.mxu0 0.0
      %448 = vmatpush1.msra.mxu0 0.0
      %449 = vmatprep.subr.mxu0 0.0
      %450 = vmatpush1.msra.mxu0 0.0
      %451 = vmatprep.subr.mxu0 0.0
      %452 = vmatpush1.msra.mxu0 0.0
      %453 = vmatprep.subr.mxu0 0.0
      %454 = vmatpush1.msra.mxu0 0.0
      %455 = vmatprep.subr.mxu0 0.0
      %456 = vmatpush1.msra.mxu0 0.0
      %457 = vmatprep.subr.mxu0 0.0
      %458 = vmatpush1.msra.mxu0 0.0
      %459 = vmatprep.subr.mxu0 0.0
      %460 = vmatpush1.msra.mxu0 0.0
      %461 = vmatprep.subr.mxu0 %v408
      %462 = vmatpush1.msra.mxu0 %v407
      %463 = vmatprep.subr.mxu0 0.0
      %464 = vmatpush2.msra.mxu0 0.0
      %465 = vmatprep.subr.mxu0 0.0
      %466 = vmatpush2.msra.mxu0 0.0
      %467 = vmatprep.subr.mxu0 0.0
      %468 = vmatpush2.msra.mxu0 0.0
      %469 = vmatprep.subr.mxu0 0.0
      %470 = vmatpush2.msra.mxu0 0.0
      %471 = vmatprep.subr.mxu0 0.0
      %472 = vmatpush2.msra.mxu0 0.0
      %473 = vmatprep.subr.mxu0 0.0
      %474 = vmatpush2.msra.mxu0 0.0
      %475 = vmatprep.subr.mxu0 0.0
      %476 = vmatpush2.msra.mxu0 0.0
      %477 = vmatprep.subr.mxu0 0.0
      %478 = vmatpush2.msra.mxu0 0.0
      %479 = vmatprep.subr.mxu0 0.0
      %480 = vmatpush2.msra.mxu0 0.0
      %481 = vmatprep.subr.mxu0 0.0
      %482 = vmatpush2.msra.mxu0 0.0
      %483 = vmatprep.subr.mxu0 0.0
      %484 = vmatpush2.msra.mxu0 0.0
      %485 = vmatprep.subr.mxu0 0.0
      %486 = vmatpush2.msra.mxu0 0.0
      %487 = vmatprep.subr.mxu0 0.0
      %488 = vmatpush2.msra.mxu0 0.0
      %489 = vmatprep.subr.mxu0 0.0
      %490 = vmatpush2.msra.mxu0 0.0
      %491 = vmatprep.subr.mxu0 0.0
      %492 = vmatpush2.msra.mxu0 0.0
      %493 = vmatprep.subr.mxu0 0.0
      %494 = vmatpush2.msra.mxu0 0.0
      %495 = vmatprep.mubr.f32.mxu0 0.0
      %496 = vmatmul.mubr.f32.gmra.mxu0 %v426
      %v497 = vpop.f32.mrf.mxu0
      %v498 = vadd.f32 %v417, %v497
      %v499 = vpop.f32.mrf.mxu0
      %v500 = vadd.f32 %v417, %v499
      %501 = vmatprep.mubr.f32.mxu0 0.0
      %502 = vmatmul.mubr.f32.gmra.mxu0 %v429
      %v503 = vpop.f32.mrf.mxu0
      %v504 = vadd.f32 %v422, %v503
      %v505 = vpop.f32.mrf.mxu0
      %v506 = vadd.f32 %v422, %v505
      %507 = vdwg.mxu0
      %508 = vmatprep.subr.mxu0 0.0
      %509 = vmatpush1.msra.mxu0 0.0
      %510 = vmatprep.subr.mxu0 0.0
      %511 = vmatpush1.msra.mxu0 0.0
      %512 = vmatprep.subr.mxu0 0.0
      %513 = vmatpush1.msra.mxu0 0.0
      %514 = vmatprep.subr.mxu0 0.0
      %515 = vmatpush1.msra.mxu0 0.0
      %516 = vmatprep.subr.mxu0 0.0
      %517 = vmatpush1.msra.mxu0 0.0
      %518 = vmatprep.subr.mxu0 0.0
      %519 = vmatpush1.msra.mxu0 0.0
      %520 = vmatprep.subr.mxu0 0.0
      %521 = vmatpush1.msra.mxu0 0.0
      %522 = vmatprep.subr.mxu0 0.0
      %523 = vmatpush1.msra.mxu0 0.0
      %524 = vmatprep.subr.mxu0 0.0
      %525 = vmatpush1.msra.mxu0 0.0
      %526 = vmatprep.subr.mxu0 0.0
      %527 = vmatpush1.msra.mxu0 0.0
      %528 = vmatprep.subr.mxu0 0.0
      %529 = vmatpush1.msra.mxu0 0.0
      %530 = vmatprep.subr.mxu0 0.0
      %531 = vmatpush1.msra.mxu0 0.0
      %532 = vmatprep.subr.mxu0 0.0
      %533 = vmatpush1.msra.mxu0 0.0
      %534 = vmatprep.subr.mxu0 0.0
      %535 = vmatpush1.msra.mxu0 0.0
      %536 = vmatprep.subr.mxu0 0.0
      %537 = vmatpush1.msra.mxu0 0.0
      %538 = vmatprep.subr.mxu0 0.0
      %539 = vmatpush1.msra.mxu0 %v409
      %540 = vmatprep.subr.mxu0 0.0
      %541 = vmatpush2.msra.mxu0 0.0
      %542 = vmatprep.subr.mxu0 0.0
      %543 = vmatpush2.msra.mxu0 0.0
      %544 = vmatprep.subr.mxu0 0.0
      %545 = vmatpush2.msra.mxu0 0.0
      %546 = vmatprep.subr.mxu0 0.0
      %547 = vmatpush2.msra.mxu0 0.0
      %548 = vmatprep.subr.mxu0 0.0
      %549 = vmatpush2.msra.mxu0 0.0
      %550 = vmatprep.subr.mxu0 0.0
      %551 = vmatpush2.msra.mxu0 0.0
      %552 = vmatprep.subr.mxu0 0.0
      %553 = vmatpush2.msra.mxu0 0.0
      %554 = vmatprep.subr.mxu0 0.0
      %555 = vmatpush2.msra.mxu0 0.0
      %556 = vmatprep.subr.mxu0 0.0
      %557 = vmatpush2.msra.mxu0 0.0
      %558 = vmatprep.subr.mxu0 0.0
      %559 = vmatpush2.msra.mxu0 0.0
      %560 = vmatprep.subr.mxu0 0.0
      %561 = vmatpush2.msra.mxu0 0.0
      %562 = vmatprep.subr.mxu0 0.0
      %563 = vmatpush2.msra.mxu0 0.0
      %564 = vmatprep.subr.mxu0 0.0
      %565 = vmatpush2.msra.mxu0 0.0
      %566 = vmatprep.subr.mxu0 0.0
      %567 = vmatpush2.msra.mxu0 0.0
      %568 = vmatprep.subr.mxu0 0.0
      %569 = vmatpush2.msra.mxu0 0.0
      %570 = vmatprep.subr.mxu0 0.0
      %571 = vmatpush2.msra.mxu0 0.0
      %572 = vmatprep.mubr.f32.mxu0 0.0
      %573 = vmatmul.mubr.f32.gmra.mxu0 %v426
      %v574 = vpop.f32.mrf.mxu0
      %v575 = vadd.f32 %v417, %v574
      %v576 = vpop.f32.mrf.mxu0
      %577 = vmatprep.mubr.f32.mxu0 0.0
      %578 = vmatmul.mubr.f32.gmra.mxu0 %v429
      %v579 = vpop.f32.mrf.mxu0
      %v580 = vadd.f32 %v422, %v579
      %v581 = vpop.f32.mrf.mxu0
      %582 = vdwg.mxu0
      %583 = vst [vmem:[%s197] sm:$0xff] %v498
      %584 = vst [vmem:[%s197 + $0x8] sm:$0xff] %v500
      %vm585 = vcmask 244736
      %586 = vst.msk [vmem:[%s197 + $0x10] sm:$0xff] %vm585, %v575
      %587 = vst [vmem:[%s197 + $0x18] sm:$0xff] %v504
      %588 = vst [vmem:[%s197 + $0x20] sm:$0xff] %v506
      %589 = vst.msk [vmem:[%s197 + $0x28] sm:$0xff] %vm585, %v580
      %p590 = scmp.lt.s32.totalorder %s15, 1
      %s591 = scalar_select %p590, %s15, 1
      %s592 = smul.addr %s591, 6
      %s593 = smul.addr %s592, 8
      %s594 = scalar_lea.vmem %s4, %s593
      // Predicated region
      $region37: #{separable_conv_block.1} parent=35 // pred_check
        %p595 = pneg %p122
      $region38: #{separable_conv_block.1} parent=35 // pred_check_branch
        %597 = sbr.rel (%p595) target = $region40
      $region39: #{separable_conv_block.1} parent=35 // pred_region
        _
      $region40: #{separable_conv_block.1} parent=35 // pred_fallthru
        _
    $region36: #{separable_conv_block.1} parent=5 // pred_fallthru
      _
    %p598 = scmp.le.s32.totalorder 2, %s10
    // Predicated region
    $region41: #{separable_conv_block.1} parent=5 // pred_check
      %p599 = pneg %p598
    $region42: #{separable_conv_block.1} parent=5 // pred_check_branch
      %601 = sbr.rel (%p599) target = $region44
    $region43: #{separable_conv_block.1} parent=5 // pred_region
      %s602 = ssub.s32 %s10, 2
      // Predicated region
      $region45: #{separable_conv_block.1} parent=43 // pred_check
        %p603 = pneg %p128
      $region46: #{separable_conv_block.1} parent=43 // pred_check_branch
        %605 = sbr.rel (%p603) target = $region48
      $region47: #{separable_conv_block.1} parent=43 // pred_region
        %p606 = scmp.lt.s32.totalorder %s16, 1
        %s607 = scalar_select %p606, %s16, 1
        %s608 = smul.addr %s607, 6
        %s609 = smul.addr %s608, 8
        %s610 = scalar_lea.vmem %s4, %s609
      $region48: #{separable_conv_block.1} parent=43 // pred_fallthru
        _
    $region44: #{separable_conv_block.1} parent=5 // pred_fallthru
      _
  $region6: #{separable_conv_block.1} parent=0 // loop_footer
    %s14 = sadd.s32 1, %s10
  $region7: #{separable_conv_block.1} parent=0 // loop_footer_branch
    %9 = sbr.rel target = $region3
  $region8: #{separable_conv_block.1} parent=0 // loop_exit
    _

</llo_original>
